<compile_context>
chip_gen: v5e
topology: v5e:2x2
jax: 0.10.0
libtpu: 0.0.40
codegen_flags: <defaults>
</compile_context>

<pallas_src>
import functools

import jax
import jax.numpy as jnp
from jax.experimental import pallas as pl
from jax.experimental.pallas import tpu as pltpu


# ----------------------------------------------------------------------------
# helpers
# ----------------------------------------------------------------------------
def _round_up(x, m):
    return (x + m - 1) // m * m


def _pad2(a, rows, cols):
    return jnp.pad(a, ((0, rows - a.shape[0]), (0, cols - a.shape[1])))


_VMEM_LIMIT_CACHE = [None]


def _vmem_limit_bytes():
    """Generation-aware scoped-VMEM limit (~75% of physical capacity)."""
    if _VMEM_LIMIT_CACHE[0] is None:
        cap = 64 * 1024 * 1024          # conservative fallback (v7x-sized)
        try:
            cap = int(pltpu.get_tpu_info().vmem_capacity_bytes)
        except Exception:
            pass
        _VMEM_LIMIT_CACHE[0] = max(32 * 1024 * 1024, (cap * 3) // 4)
    return _VMEM_LIMIT_CACHE[0]


def _pick_tile(dim, pref):
    """Largest multiple of 128 dividing `dim` (itself a 128-multiple), <= pref."""
    t = max(128, (min(pref, dim) // 128) * 128)
    while dim % t:
        t -= 128
    return t


def _pick_row_tile(dim, pref):
    """Row tile for kernels whose row axis is 'parallel': keep >=2 blocks so
    both v7x TensorCores get work when the dimension allows it."""
    t = _pick_tile(dim, pref)
    if t == dim and dim >= 256:
        t = _pick_tile(dim, dim // 2)
    return t


# ----------------------------------------------------------------------------
# Pallas kernels
# ----------------------------------------------------------------------------
def _complex_linear_kernel(*refs, relu, real_input, compute_dtype):
    """Tiled (X_r + i X_i) @ (W_r + i W_i) + bias, optional complex ReLU.

    Grid = (M tiles, N tiles, K tiles); K innermost with f32 accumulators.
    If real_input, X_i is absent and 2 of the 4 matmuls are skipped.
    """
    if real_input:
        (xr_ref, wr_ref, wi_ref, br_ref, bi_ref,
         yr_ref, yi_ref, accr_ref, acci_ref) = refs
    else:
        (xr_ref, xi_ref, wr_ref, wi_ref, br_ref, bi_ref,
         yr_ref, yi_ref, accr_ref, acci_ref) = refs

    k = pl.program_id(2)

    @pl.when(k == 0)
    def _():
        accr_ref[...] = jnp.zeros_like(accr_ref)
        acci_ref[...] = jnp.zeros_like(acci_ref)

    xr = xr_ref[...].astype(compute_dtype)
    wr = wr_ref[...].astype(compute_dtype)
    wi = wi_ref[...].astype(compute_dtype)
    if real_input:
        accr_ref[...] += jnp.dot(xr, wr, preferred_element_type=jnp.float32)
        acci_ref[...] += jnp.dot(xr, wi, preferred_element_type=jnp.float32)
    else:
        xi = xi_ref[...].astype(compute_dtype)
        accr_ref[...] += (jnp.dot(xr, wr, preferred_element_type=jnp.float32)
                          - jnp.dot(xi, wi, preferred_element_type=jnp.float32))
        acci_ref[...] += (jnp.dot(xr, wi, preferred_element_type=jnp.float32)
                          + jnp.dot(xi, wr, preferred_element_type=jnp.float32))

    @pl.when(k == pl.num_programs(2) - 1)
    def _():
        yr = accr_ref[...] + br_ref[...]
        yi = acci_ref[...] + bi_ref[...]
        if relu:  # complex_relu: ReLU on real/imag parts independently
            yr = jnp.maximum(yr, 0.0)
            yi = jnp.maximum(yi, 0.0)
        yr_ref[...] = yr
        yi_ref[...] = yi


def _fused_conv_kernel(adj_ref, cos_ref, sin_ref, hr0_ref, hi0_ref,
                       outr_ref, outi_ref,
                       hpre_r_ref, hpre_i_ref, accr_ref, acci_ref,
                       *, tm, tk, compute_dtype):
    """All AngularAggLayers fused; H stays resident in VMEM across layers.

    Grid = (layer, destination tile i, source tile k), all 'arbitrary'
    (sequential) because of the cross-iteration VMEM dependencies.
    At (l, 0, 0) the whole H is pre-rotated by e^{-i theta_l} ONCE into
    scratch; the inner loop then does only 2 real matmuls per adj tile.
    """
    l = pl.program_id(0)
    i = pl.program_id(1)
    k = pl.program_id(2)
    layer_start = jnp.logical_and(i == 0, k == 0)

    def _prerot(hr_cur, hi_cur):
        cs = cos_ref[0]                       # (N_p, 1) phasors of layer l
        sn = sin_ref[0]
        hpre_r_ref[...] = (cs * hr_cur + sn * hi_cur).astype(hpre_r_ref.dtype)
        hpre_i_ref[...] = (cs * hi_cur - sn * hr_cur).astype(hpre_i_ref.dtype)

    @pl.when(jnp.logical_and(layer_start, l == 0))
    def _():
        _prerot(hr0_ref[...], hi0_ref[...])     # first layer reads fcs[0] output

    @pl.when(jnp.logical_and(layer_start, l > 0))
    def _():
        _prerot(outr_ref[...], outi_ref[...])   # later layers read previous H

    @pl.when(k == 0)
    def _():
        accr_ref[...] = jnp.zeros_like(accr_ref)
        acci_ref[...] = jnp.zeros_like(acci_ref)

    adj = adj_ref[...].astype(compute_dtype)
    koff = pl.multiple_of(k * tk, tk)
    hr_k = hpre_r_ref[pl.ds(koff, tk), :]
    hi_k = hpre_i_ref[pl.ds(koff, tk), :]
    accr_ref[...] += jnp.dot(adj, hr_k, preferred_element_type=jnp.float32)
    acci_ref[...] += jnp.dot(adj, hi_k, preferred_element_type=jnp.float32)

    @pl.when(k == pl.num_programs(2) - 1)
    def _():
        ioff = pl.multiple_of(i * tm, tm)
        cu = cos_ref[0, pl.ds(ioff, tm), :]     # destination-node phasors
        su = sin_ref[0, pl.ds(ioff, tm), :]
        zr = accr_ref[...]
        zi = acci_ref[...]
        # post-rotate by e^{+i theta_u}, complex ReLU, write new H in place
        outr_ref[pl.ds(ioff, tm), :] = jnp.maximum(cu * zr - su * zi, 0.0)
        outi_ref[pl.ds(ioff, tm), :] = jnp.maximum(cu * zi + su * zr, 0.0)


def _angular_agg_kernel(adj_ref, hr_ref, hi_ref, cu_ref, su_ref,
                        or_ref, oi_ref, accr_ref, acci_ref, *, compute_dtype):
    """Fallback per-layer AngularAgg (inputs already pre-rotated once/layer)."""
    k = pl.program_id(1)

    @pl.when(k == 0)
    def _():
        accr_ref[...] = jnp.zeros_like(accr_ref)
        acci_ref[...] = jnp.zeros_like(acci_ref)

    adj = adj_ref[...].astype(compute_dtype)
    accr_ref[...] += jnp.dot(adj, hr_ref[...].astype(compute_dtype),
                             preferred_element_type=jnp.float32)
    acci_ref[...] += jnp.dot(adj, hi_ref[...].astype(compute_dtype),
                             preferred_element_type=jnp.float32)

    @pl.when(k == pl.num_programs(1) - 1)
    def _():
        cu = cu_ref[...]
        su = su_ref[...]
        zr = accr_ref[...]
        zi = acci_ref[...]
        or_ref[...] = jnp.maximum(cu * zr - su * zi, 0.0)
        oi_ref[...] = jnp.maximum(cu * zi + su * zr, 0.0)


def _final_kernel(xr_ref, xi_ref, wr_ref, wi_ref, br_ref, bi_ref, out_ref,
                  accr_ref, acci_ref, *, num_class, compute_dtype):
    """Final ComplexLinear -> angle -> log_softmax over (padded) class lanes."""
    k = pl.program_id(1)

    @pl.when(k == 0)
    def _():
        accr_ref[...] = jnp.zeros_like(accr_ref)
        acci_ref[...] = jnp.zeros_like(acci_ref)

    xr = xr_ref[...].astype(compute_dtype)
    xi = xi_ref[...].astype(compute_dtype)
    wr = wr_ref[...].astype(compute_dtype)
    wi = wi_ref[...].astype(compute_dtype)
    accr_ref[...] += (jnp.dot(xr, wr, preferred_element_type=jnp.float32)
                      - jnp.dot(xi, wi, preferred_element_type=jnp.float32))
    acci_ref[...] += (jnp.dot(xr, wi, preferred_element_type=jnp.float32)
                      + jnp.dot(xi, wr, preferred_element_type=jnp.float32))

    @pl.when(k == pl.num_programs(1) - 1)
    def _():
        yr = accr_ref[...] + br_ref[...]
        yi = acci_ref[...] + bi_ref[...]
        ang = jnp.arctan2(yi, yr)                           # torch.angle
        col = jax.lax.broadcasted_iota(jnp.int32, ang.shape, 1)
        valid = col < num_class
        ang_m = jnp.where(valid, ang, jnp.float32(-1e30))
        m = jnp.max(ang_m, axis=1, keepdims=True)
        e = jnp.where(valid, jnp.exp(ang - m), 0.0)
        lse = jnp.log(jnp.sum(e, axis=1, keepdims=True)) + m
        out_ref[...] = ang - lse    # padded lanes are garbage; sliced off


# ----------------------------------------------------------------------------
# pallas_call wrappers
# ----------------------------------------------------------------------------
def complex_linear(xr, xi, wr, wi, br, bi, *, relu, tm, tn, tk,
                   compute_dtype=jnp.float32):
    M, K = xr.shape
    _, N = wr.shape
    real_input = xi is None
    gm, gn, gk = M // tm, N // tn, K // tk

    x_spec = pl.BlockSpec((tm, tk), lambda i, j, k: (i, k))
    w_spec = pl.BlockSpec((tk, tn), lambda i, j, k: (k, j))
    b_spec = pl.BlockSpec((1, tn), lambda i, j, k: (0, j))
    o_spec = pl.BlockSpec((tm, tn), lambda i, j, k: (i, j))

    in_specs = ([x_spec] + ([] if real_input else [x_spec])
                + [w_spec, w_spec, b_spec, b_spec])
    args = (xr,) + (() if real_input else (xi,)) + (wr, wi, br, bi)

    kernel = functools.partial(_complex_linear_kernel, relu=relu,
                               real_input=real_input,
                               compute_dtype=compute_dtype)
    return pl.pallas_call(
        kernel,
        grid=(gm, gn, gk),
        in_specs=in_specs,
        out_specs=[o_spec, o_spec],
        out_shape=[jax.ShapeDtypeStruct((M, N), jnp.float32)] * 2,
        scratch_shapes=[pltpu.VMEM((tm, tn), jnp.float32),
                        pltpu.VMEM((tm, tn), jnp.float32)],
        compiler_params=pltpu.CompilerParams(
            dimension_semantics=("parallel", "parallel", "arbitrary"),
            vmem_limit_bytes=_vmem_limit_bytes()),
    )(*args)


def fused_conv_stack(adj, hr, hi, cos_all, sin_all, *, tm, tk,
                     compute_dtype=jnp.float32):
    """All conv layers in one kernel; H resident in VMEM across layers."""
    N_p, H_p = hr.shape
    L = cos_all.shape[0]
    gm, gk = N_p // tm, N_p // tk

    kernel = functools.partial(_fused_conv_kernel, tm=tm, tk=tk,
                               compute_dtype=compute_dtype)
    return pl.pallas_call(
        kernel,
        grid=(L, gm, gk),
        in_specs=[
            pl.BlockSpec((tm, tk), lambda l, i, k: (i, k)),          # adj tile
            pl.BlockSpec((1, N_p, 1), lambda l, i, k: (l, 0, 0)),    # cos(theta_l)
            pl.BlockSpec((1, N_p, 1), lambda l, i, k: (l, 0, 0)),    # sin(theta_l)
            pl.BlockSpec((N_p, H_p), lambda l, i, k: (0, 0)),        # H0 real
            pl.BlockSpec((N_p, H_p), lambda l, i, k: (0, 0)),        # H0 imag
        ],
        out_specs=[pl.BlockSpec((N_p, H_p), lambda l, i, k: (0, 0))] * 2,
        out_shape=[jax.ShapeDtypeStruct((N_p, H_p), jnp.float32)] * 2,
        scratch_shapes=[pltpu.VMEM((N_p, H_p), compute_dtype),   # pre-rotated H real
                        pltpu.VMEM((N_p, H_p), compute_dtype),   # pre-rotated H imag
                        pltpu.VMEM((tm, H_p), jnp.float32),      # acc real
                        pltpu.VMEM((tm, H_p), jnp.float32)],     # acc imag
        compiler_params=pltpu.CompilerParams(
            # cross-iteration VMEM dependencies (H carried across layers) =>
            # sequential; on v7x the conv stack runs on one TensorCore.
            dimension_semantics=("arbitrary", "arbitrary", "arbitrary"),
            vmem_limit_bytes=_vmem_limit_bytes()),
    )(adj, cos_all, sin_all, hr, hi)


def angular_agg(adj, hpr, hpi, cos_u, sin_u, *, tm, tk,
                compute_dtype=jnp.float32):
    """Fallback per-layer aggregation (H does not fit VMEM residency)."""
    N, _ = adj.shape
    _, H = hpr.shape
    gm, gk = N // tm, N // tk

    kernel = functools.partial(_angular_agg_kernel, compute_dtype=compute_dtype)
    return pl.pallas_call(
        kernel,
        grid=(gm, gk),
        in_specs=[pl.BlockSpec((tm, tk), lambda i, k: (i, k)),
                  pl.BlockSpec((tk, H), lambda i, k: (k, 0)),
                  pl.BlockSpec((tk, H), lambda i, k: (k, 0)),
                  pl.BlockSpec((tm, 1), lambda i, k: (i, 0)),
                  pl.BlockSpec((tm, 1), lambda i, k: (i, 0))],
        out_specs=[pl.BlockSpec((tm, H), lambda i, k: (i, 0))] * 2,
        out_shape=[jax.ShapeDtypeStruct((N, H), jnp.float32)] * 2,
        scratch_shapes=[pltpu.VMEM((tm, H), jnp.float32),
                        pltpu.VMEM((tm, H), jnp.float32)],
        compiler_params=pltpu.CompilerParams(
            dimension_semantics=("parallel", "arbitrary"),
            vmem_limit_bytes=_vmem_limit_bytes()),
    )(adj, hpr, hpi, cos_u, sin_u)


def angle_logsoftmax(xr, xi, wr, wi, br, bi, *, num_class, tm, tk,
                     compute_dtype=jnp.float32):
    M, K = xr.shape
    _, C = wr.shape
    gm, gk = M // tm, K // tk

    x_spec = pl.BlockSpec((tm, tk), lambda i, k: (i, k))
    w_spec = pl.BlockSpec((tk, C), lambda i, k: (k, 0))
    b_spec = pl.BlockSpec((1, C), lambda i, k: (0, 0))
    o_spec = pl.BlockSpec((tm, C), lambda i, k: (i, 0))

    kernel = functools.partial(_final_kernel, num_class=num_class,
                               compute_dtype=compute_dtype)
    return pl.pallas_call(
        kernel,
        grid=(gm, gk),
        in_specs=[x_spec, x_spec, w_spec, w_spec, b_spec, b_spec],
        out_specs=o_spec,
        out_shape=jax.ShapeDtypeStruct((M, C), jnp.float32),
        scratch_shapes=[pltpu.VMEM((tm, C), jnp.float32),
                        pltpu.VMEM((tm, C), jnp.float32)],
        compiler_params=pltpu.CompilerParams(
            dimension_semantics=("parallel", "arbitrary"),
            vmem_limit_bytes=_vmem_limit_bytes()),
    )(xr, xi, wr, wi, br, bi)


# ----------------------------------------------------------------------------
# CGNN model (parameter init + forward)
# ----------------------------------------------------------------------------
def init_params(key, num_features, num_layers, num_hidden, num_class):
    ks = jax.random.split(key, 4 + num_layers)

    def lin(kr, ki, fan_in, fan_out):
        s = 1.0 / jnp.sqrt(jnp.float32(fan_in))
        return (jax.random.uniform(kr, (fan_in, fan_out), jnp.float32, -s, s),
                jax.random.uniform(ki, (fan_in, fan_out), jnp.float32, -s, s))

    w0r, w0i = lin(ks[0], ks[1], num_features, num_hidden)
    w1r, w1i = lin(ks[2], ks[3], num_hidden, num_class)
    return {
        "w0r": w0r, "w0i": w0i,
        "b0r": jnp.zeros((1, num_hidden), jnp.float32),
        "b0i": jnp.zeros((1, num_hidden), jnp.float32),
        "w1r": w1r, "w1i": w1i,
        "b1r": jnp.zeros((1, num_class), jnp.float32),
        "b1i": jnp.zeros((1, num_class), jnp.float32),
        "convs": [
            {"theta": jax.random.uniform(ks[4 + i], (num_class,), jnp.float32,
                                         -jnp.pi, jnp.pi)}
            for i in range(num_layers)
        ],
    }


def cgnn_forward(params, x, adj, labels, *, compute_dtype=jnp.float32,
                 fuse_convs=None):
    # For large graphs on v6e/v7x, pass compute_dtype=jnp.bfloat16: adj (the
    # dominant HBM stream) and the pre-rotated H scratch are stored at bf16,
    # MXU runs at bf16 rate; accumulation/rotations/finalize stay f32.
    n, f = x.shape
    h = params["w0r"].shape[1]
    c = params["w1r"].shape[1]
    num_layers = len(params["convs"])
    itemsize = jnp.dtype(compute_dtype).itemsize
    vmem_limit = _vmem_limit_bytes()

    # lane-dense zero padding; padded rows/cols contribute zeros and are
    # sliced off at the end, so semantics match.
    n_p = _round_up(n, 128)
    h_p = _round_up(h, 128)
    c_p = _round_up(c, 128)
    # input-projection K: single full-dim K block only needs sublane alignment
    if f <= 512:
        f_p = _round_up(f, 8)
        tk0 = f_p
    else:
        f_p = _round_up(f, 128)
        tk0 = _pick_tile(f_p, 512)

    tm_lin = _pick_row_tile(n_p, 512)   # parallel row axis: keep >=2 blocks (v7x)
    tn0 = _pick_tile(h_p, 256)          # 256-multiples preferred for v6e/v7x MXU
    tk1 = _pick_tile(h_p, 512)
    tm_conv = _pick_tile(n_p, 512)      # big tiles -> better HBM roofline fraction
    tk_conv = _pick_tile(n_p, 512)

    x_p = _pad2(x, n_p, f_p)
    adj_p = _pad2(adj, n_p, n_p).astype(compute_dtype)
    w0r = _pad2(params["w0r"], f_p, h_p); w0i = _pad2(params["w0i"], f_p, h_p)
    b0r = _pad2(params["b0r"], 1, h_p);   b0i = _pad2(params["b0i"], 1, h_p)
    w1r = _pad2(params["w1r"], h_p, c_p); w1i = _pad2(params["w1i"], h_p, c_p)
    b1r = _pad2(params["b1r"], 1, c_p);   b1i = _pad2(params["b1i"], 1, c_p)

    # fcs[0] + complex_relu (input purely real -> 2 matmuls, not 4).
    # NOTE: with nonzero b0 the padded node rows become relu(b0) != 0; this is
    # harmless because the corresponding adj rows/cols are zero and padded
    # output rows are sliced off.
    hr, hi = complex_linear(x_p, None, w0r, w0i, b0r, b0i, relu=True,
                            tm=tm_lin, tn=tn0, tk=tk0,
                            compute_dtype=compute_dtype)

    if num_layers:
        thetas = jnp.stack([layer["theta"][labels] for layer in params["convs"]])
        thetas = jnp.pad(thetas, ((0, 0), (0, n_p - n)))       # (L, n_p)
        cos_all = jnp.cos(thetas)[..., None]                   # (L, n_p, 1)
        sin_all = jnp.sin(thetas)[..., None]

        if fuse_convs is None:
            # conservative VMEM residency estimate for the fused path
            resident = (10 * n_p * h_p * 4
                        + 4 * tm_conv * tk_conv * itemsize
                        + 2 * tm_conv * h_p * 4)
            fuse_convs = resident <= int(0.8 * vmem_limit)

        if fuse_convs:
            hr, hi = fused_conv_stack(adj_p, hr, hi, cos_all, sin_all,
                                      tm=tm_conv, tk=tk_conv,
                                      compute_dtype=compute_dtype)
        else:
            # Fallback for graphs whose H does not fit in VMEM: per-layer
            # kernel; the e^{-i theta_v} pre-rotation is hoisted out of the
            # destination-tile loop (one fused elementwise pass per layer).
            # TODO(synk): fold this pre-rotation into the previous layer's
            #             finalize to save one HBM round-trip of H per layer.
            tm_fb = _pick_row_tile(n_p, 512)
            for li in range(num_layers):
                cs, sn = cos_all[li], sin_all[li]
                hpr = cs * hr + sn * hi
                hpi = cs * hi - sn * hr
                hr, hi = angular_agg(adj_p, hpr, hpi, cs, sn,
                                     tm=tm_fb, tk=tk_conv,
                                     compute_dtype=compute_dtype)

    # fcs[-1] -> angle -> log_softmax(dim=1), then drop padding
    out_p = angle_logsoftmax(hr, hi, w1r, w1i, b1r, b1i, num_class=c,
                             tm=tm_lin, tk=tk1, compute_dtype=compute_dtype)
    return out_p[:n, :c]


# pure-JAX reference (for correctness check)
def cgnn_reference(params, x, adj, labels):
    def crelu(z):
        return jnp.maximum(z.real, 0.0) + 1j * jnp.maximum(z.imag, 0.0)

    w0 = params["w0r"] + 1j * params["w0i"]
    b0 = params["b0r"] + 1j * params["b0i"]
    w1 = params["w1r"] + 1j * params["w1i"]
    b1 = params["b1r"] + 1j * params["b1i"]
    h = crelu(x.astype(jnp.complex64) @ w0 + b0)
    for layer in params["convs"]:
        nt = layer["theta"][labels]
        a = adj * jnp.exp(1j * (nt[:, None] - nt[None, :]))
        h = crelu(a @ h)
    ang = jnp.angle(h @ w1 + b1)
    return ang - jax.scipy.special.logsumexp(ang, axis=1, keepdims=True)


# ----------------------------------------------------------------------------
if __name__ == "__main__":
    # small graph, but big enough (>128 nodes) that tiling, pl.when
    # init/finalize, padding and the layer-fusion path are all exercised.
    num_nodes, num_features, num_hidden, num_class, num_layers = 160, 16, 32, 8, 2

    key = jax.random.PRNGKey(0)
    kx, ka, kl, kp = jax.random.split(key, 4)

    x = jax.random.normal(kx, (num_nodes, num_features), jnp.float32)
    labels = jax.random.randint(kl, (num_nodes,), 0, num_class)

    # symmetric, row-normalized adjacency with self loops
    a = (jax.random.uniform(ka, (num_nodes, num_nodes)) < 0.1).astype(jnp.float32)
    a = jnp.maximum(a, a.T) + jnp.eye(num_nodes, dtype=jnp.float32)
    adj = a / jnp.sum(a, axis=1, keepdims=True)

    params = init_params(kp, num_features, num_layers, num_hidden, num_class)
    ref = cgnn_reference(params, x, adj, labels)

    # primary (fused conv stack) path
    out_fused = jax.block_until_ready(
        cgnn_forward(params, x, adj, labels, fuse_convs=True))
    # fallback (per-layer, hoisted pre-rotation) path
    out_layer = jax.block_until_ready(
        cgnn_forward(params, x, adj, labels, fuse_convs=False))

    assert out_fused.shape == (num_nodes, num_class)
    assert jnp.allclose(out_fused, ref, atol=5e-3), (
        "fused-path mismatch vs pure-JAX reference, max|diff|="
        f"{float(jnp.max(jnp.abs(out_fused - ref)))}")
    assert jnp.allclose(out_layer, ref, atol=5e-3), (
        "layered-path mismatch vs pure-JAX reference, max|diff|="
        f"{float(jnp.max(jnp.abs(out_layer - ref)))}")

    print("KERNEL_OK")
</pallas_src>

<mosaic_0001>
module attributes {stable_mosaic.version = 11 : i64} {
  func.func @_complex_linear_kernel(%arg0: i32, %arg1: i32, %arg2: i32, %arg3: memref<128x16xf32, #tpu.memory_space<vmem>>, %arg4: memref<16x128xf32, #tpu.memory_space<vmem>>, %arg5: memref<16x128xf32, #tpu.memory_space<vmem>>, %arg6: memref<1x128xf32, #tpu.memory_space<vmem>>, %arg7: memref<1x128xf32, #tpu.memory_space<vmem>>, %arg8: memref<128x128xf32, #tpu.memory_space<vmem>>, %arg9: memref<128x128xf32, #tpu.memory_space<vmem>>, %arg10: memref<128x128xf32, #tpu.memory_space<vmem>>, %arg11: memref<128x128xf32, #tpu.memory_space<vmem>>) attributes {dimension_semantics = [#tpu.dimension_semantics<parallel>, #tpu.dimension_semantics<parallel>, #tpu.dimension_semantics<arbitrary>], iteration_bounds = array<i64: 2, 1, 1>, scalar_prefetch = 0 : i64, scratch_operands = 2 : i64, tpu.core_type = #tpu.core_type<tc>, window_params = [{transform_indices = @transform_0, window_bounds = array<i64: 128, 16>}, {transform_indices = @transform_1, window_bounds = array<i64: 16, 128>}, {transform_indices = @transform_2, window_bounds = array<i64: 16, 128>}, {transform_indices = @transform_3, window_bounds = array<i64: 1, 128>}, {transform_indices = @transform_4, window_bounds = array<i64: 1, 128>}, {transform_indices = @transform_5, window_bounds = array<i64: 128, 128>}, {transform_indices = @transform_6, window_bounds = array<i64: 128, 128>}]} {
    %c0_i32 = arith.constant 0 : i32
    %0 = arith.cmpi eq, %arg2, %c0_i32 : i32
    %1 = arith.extui %0 : i1 to i32
    %c0_i32_0 = arith.constant 0 : i32
    %2 = arith.cmpi ne, %1, %c0_i32_0 : i32
    scf.if %2 {
      %cst_17 = arith.constant 0.000000e+00 : f32
      %17 = vector.broadcast %cst_17 : f32 to vector<128x128xf32>
      %c0_18 = arith.constant 0 : index
      %c0_19 = arith.constant 0 : index
      %18 = vector.load %arg10[%c0_18, %c0_19] : memref<128x128xf32, #tpu.memory_space<vmem>>, vector<128x128xf32>
      tpu.vector_store %arg10[%c0_18, %c0_19], %17 {strides = array<i32>} : memref<128x128xf32, #tpu.memory_space<vmem>>, vector<128x128xf32>,
      %cst_20 = arith.constant 0.000000e+00 : f32
      %19 = vector.broadcast %cst_20 : f32 to vector<128x128xf32>
      %c0_21 = arith.constant 0 : index
      %c0_22 = arith.constant 0 : index
      %20 = vector.load %arg11[%c0_21, %c0_22] : memref<128x128xf32, #tpu.memory_space<vmem>>, vector<128x128xf32>
      tpu.vector_store %arg11[%c0_21, %c0_22], %19 {strides = array<i32>} : memref<128x128xf32, #tpu.memory_space<vmem>>, vector<128x128xf32>,
    } else {
    }
    %c0 = arith.constant 0 : index
    %c0_1 = arith.constant 0 : index
    %3 = vector.load %arg3[%c0, %c0_1] : memref<128x16xf32, #tpu.memory_space<vmem>>, vector<128x16xf32>
    %c0_2 = arith.constant 0 : index
    %c0_3 = arith.constant 0 : index
    %4 = vector.load %arg4[%c0_2, %c0_3] : memref<16x128xf32, #tpu.memory_space<vmem>>, vector<16x128xf32>
    %c0_4 = arith.constant 0 : index
    %c0_5 = arith.constant 0 : index
    %5 = vector.load %arg5[%c0_4, %c0_5] : memref<16x128xf32, #tpu.memory_space<vmem>>, vector<16x128xf32>
    %c0_6 = arith.constant 0 : index
    %c0_7 = arith.constant 0 : index
    %6 = vector.load %arg10[%c0_6, %c0_7] : memref<128x128xf32, #tpu.memory_space<vmem>>, vector<128x128xf32>
    %cst = arith.constant dense<0.000000e+00> : vector<128x128xf32>
    %7 = tpu.matmul %3, %4, %cst {dimension_numbers = #tpu.dot_dimension_numbers<[1], [0], [0], [1], [0, 0, 1, 1], [], []>} : vector<128x16xf32>, vector<16x128xf32>, vector<128x128xf32> -> vector<128x128xf32>
    %8 = arith.addf %6, %7 : vector<128x128xf32>
    %c0_8 = arith.constant 0 : index
    %c0_9 = arith.constant 0 : index
    %9 = vector.load %arg10[%c0_8, %c0_9] : memref<128x128xf32, #tpu.memory_space<vmem>>, vector<128x128xf32>
    tpu.vector_store %arg10[%c0_8, %c0_9], %8 {strides = array<i32>} : memref<128x128xf32, #tpu.memory_space<vmem>>, vector<128x128xf32>,
    %c0_10 = arith.constant 0 : index
    %c0_11 = arith.constant 0 : index
    %10 = vector.load %arg11[%c0_10, %c0_11] : memref<128x128xf32, #tpu.memory_space<vmem>>, vector<128x128xf32>
    %cst_12 = arith.constant dense<0.000000e+00> : vector<128x128xf32>
    %11 = tpu.matmul %3, %5, %cst_12 {dimension_numbers = #tpu.dot_dimension_numbers<[1], [0], [0], [1], [0, 0, 1, 1], [], []>} : vector<128x16xf32>, vector<16x128xf32>, vector<128x128xf32> -> vector<128x128xf32>
    %12 = arith.addf %10, %11 : vector<128x128xf32>
    %c0_13 = arith.constant 0 : index
    %c0_14 = arith.constant 0 : index
    %13 = vector.load %arg11[%c0_13, %c0_14] : memref<128x128xf32, #tpu.memory_space<vmem>>, vector<128x128xf32>
    tpu.vector_store %arg11[%c0_13, %c0_14], %12 {strides = array<i32>} : memref<128x128xf32, #tpu.memory_space<vmem>>, vector<128x128xf32>,
    %c0_i32_15 = arith.constant 0 : i32
    %14 = arith.cmpi eq, %arg2, %c0_i32_15 : i32
    %15 = arith.extui %14 : i1 to i32
    %c0_i32_16 = arith.constant 0 : i32
    %16 = arith.cmpi ne, %15, %c0_i32_16 : i32
    scf.if %16 {
      %c0_17 = arith.constant 0 : index
      %c0_18 = arith.constant 0 : index
      %17 = vector.load %arg10[%c0_17, %c0_18] : memref<128x128xf32, #tpu.memory_space<vmem>>, vector<128x128xf32>
      %c0_19 = arith.constant 0 : index
      %c0_20 = arith.constant 0 : index
      %18 = vector.load %arg6[%c0_19, %c0_20] : memref<1x128xf32, #tpu.memory_space<vmem>>, vector<1x128xf32>
      %19 = vector.broadcast %18 : vector<1x128xf32> to vector<128x128xf32>
      %20 = arith.addf %17, %19 : vector<128x128xf32>
      %c0_21 = arith.constant 0 : index
      %c0_22 = arith.constant 0 : index
      %21 = vector.load %arg11[%c0_21, %c0_22] : memref<128x128xf32, #tpu.memory_space<vmem>>, vector<128x128xf32>
      %c0_23 = arith.constant 0 : index
      %c0_24 = arith.constant 0 : index
      %22 = vector.load %arg7[%c0_23, %c0_24] : memref<1x128xf32, #tpu.memory_space<vmem>>, vector<1x128xf32>
      %23 = vector.broadcast %22 : vector<1x128xf32> to vector<128x128xf32>
      %24 = arith.addf %21, %23 : vector<128x128xf32>
      %cst_25 = arith.constant 0.000000e+00 : f32
      %25 = vector.broadcast %cst_25 : f32 to vector<128x128xf32>
      %26 = arith.maximumf %20, %25 : vector<128x128xf32>
      %cst_26 = arith.constant 0.000000e+00 : f32
      %27 = vector.broadcast %cst_26 : f32 to vector<128x128xf32>
      %28 = arith.maximumf %24, %27 : vector<128x128xf32>
      %c0_27 = arith.constant 0 : index
      %c0_28 = arith.constant 0 : index
      %29 = vector.load %arg8[%c0_27, %c0_28] : memref<128x128xf32, #tpu.memory_space<vmem>>, vector<128x128xf32>
      tpu.vector_store %arg8[%c0_27, %c0_28], %26 {strides = array<i32>} : memref<128x128xf32, #tpu.memory_space<vmem>>, vector<128x128xf32>,
      %c0_29 = arith.constant 0 : index
      %c0_30 = arith.constant 0 : index
      %30 = vector.load %arg9[%c0_29, %c0_30] : memref<128x128xf32, #tpu.memory_space<vmem>>, vector<128x128xf32>
      tpu.vector_store %arg9[%c0_29, %c0_30], %28 {strides = array<i32>} : memref<128x128xf32, #tpu.memory_space<vmem>>, vector<128x128xf32>,
    } else {
    }
    return
  }
  func.func @transform_0(%arg0: i32, %arg1: i32, %arg2: i32) -> (i32, i32) {
    %c0_i32 = arith.constant 0 : i32
    return %arg0, %arg2 : i32, i32
  }
  func.func @transform_1(%arg0: i32, %arg1: i32, %arg2: i32) -> (i32, i32) {
    %c0_i32 = arith.constant 0 : i32
    return %arg2, %arg1 : i32, i32
  }
  func.func @transform_2(%arg0: i32, %arg1: i32, %arg2: i32) -> (i32, i32) {
    %c0_i32 = arith.constant 0 : i32
    return %arg2, %arg1 : i32, i32
  }
  func.func @transform_3(%arg0: i32, %arg1: i32, %arg2: i32) -> (i32, i32) {
    %c0_i32 = arith.constant 0 : i32
    %c0_i32_0 = arith.constant 0 : i32
    return %c0_i32, %arg1 : i32, i32
  }
  func.func @transform_4(%arg0: i32, %arg1: i32, %arg2: i32) -> (i32, i32) {
    %c0_i32 = arith.constant 0 : i32
    %c0_i32_0 = arith.constant 0 : i32
    return %c0_i32, %arg1 : i32, i32
  }
  func.func @transform_5(%arg0: i32, %arg1: i32, %arg2: i32) -> (i32, i32) {
    %c0_i32 = arith.constant 0 : i32
    return %arg0, %arg1 : i32, i32
  }
  func.func @transform_6(%arg0: i32, %arg1: i32, %arg2: i32) -> (i32, i32) {
    %c0_i32 = arith.constant 0 : i32
    return %arg0, %arg1 : i32, i32
  }
}

</mosaic_0001>

<llo_original>
// kernel: tpu_custom_call.1
$region0: #{tpu_custom_call.1}
  #allocation0 [shape = 'u32[]', space=smem, size = 0x4, offset = 0x4, fixed_abs, tag = 'smem constant byte address 0x4 - core index']
  #allocation1 [shape = 'u32[72,128]{1,0:T(1,128)}', space=vmem, size = 0x9000, scoped, tag = 'internal scratch']
  #allocation2 [shape = 'f32[128,128]{1,0:T(8,128)}', space=vmem, size = 0x10000, scoped, tag = 'scratch operand']
  #allocation3 [shape = 'f32[128,128]{1,0:T(8,128)}', space=vmem, size = 0x10000, scoped, tag = 'scratch operand']
  %s0 = inlined_call_operand.vmem [shape: f32[256,16], index: 0, kind: input, shape index: {}]
  %s1 = inlined_call_operand.vmem [shape: f32[16,128], index: 1, kind: input, shape index: {}]
  %s2 = inlined_call_operand.vmem [shape: f32[16,128], index: 2, kind: input, shape index: {}]
  %s3 = inlined_call_operand.vmem [shape: f32[1,128], index: 3, kind: input, shape index: {}]
  %s4 = inlined_call_operand.vmem [shape: f32[1,128], index: 4, kind: input, shape index: {}]
  %s5 = inlined_call_operand.hbm [shape: f32[256,128], index: 5, kind: output, shape index: {0}]
  %s6 = inlined_call_operand.hbm [shape: f32[256,128], index: 6, kind: output, shape index: {1}]
  %7 = xla_tuple %s5, %s6
  %s8 = sld [smem:[#allocation0]]
  $region69: #{tpu_custom_call.1} parent=0
    _
  %s10 = ssub.s32 1, %s8
  %s11 = scalar_select 0, %s10, %s8
  $region1: #{tpu_custom_call.1} parent=0
    #allocation4 [shape = 'u8[131072]{0}', space=vmem, size = 0x20000, scoped, tag = 'output window, operand 0']
    #allocation5 [shape = 's32[2]{0}', space=sflag, size = 0x8, scoped, tag = 'scoped memory for tpu_custom_call.1']
    #allocation6 [shape = 'u8[131072]{0}', space=vmem, size = 0x20000, scoped, tag = 'output window, operand 1']
    #allocation7 [shape = 's32[2]{0}', space=sflag, size = 0x8, scoped, tag = 'scoped memory for tpu_custom_call.1']
    %12 = vsyncpa [#allocation5], 0
    %s13 = scalar_lea.sflag [#allocation5], 1
    %14 = vsyncpa %s13, 0
    %15 = vsyncpa [#allocation7], 0
    %s16 = scalar_lea.sflag [#allocation7], 1
    %17 = vsyncpa %s16, 0
    loop: start=0, step=1, limit=4
    $region2: #{tpu_custom_call.1} parent=1 // loop_pre_header
      _
    $region3: #{tpu_custom_call.1} parent=1 // loop_header
      %s19 = sphi 0, %s23
      %p20 = scmp.ge.s32.totalorder %s19, 4
      %s26 = sphi 0, %s45
      %s27 = sphi 0, %s41
      %s28 = sphi 0, %s37
      %s29 = sphi 0, %s26
      %s30 = sphi 0, %s27
      %s31 = sphi 0, %s28
      %s32 = sphi 0, %s29
      %s33 = sphi 0, %s30
      %s34 = sphi 0, %s31
      %s50 = sphi 0, %s52
      %s53 = sphi 0, %s50
      %s54 = sphi 0, %s53
      %s70 = sphi 0, %s54
      %s78 = sphi 0, %s80
      %s81 = sphi 0, %s78
      %s82 = sphi 0, %s81
      %s98 = sphi 0, %s82
      %s106 = sphi 0, %s108
      %s109 = sphi 0, %s106
      %s110 = sphi 0, %s109
      %s126 = sphi 0, %s110
      %s132 = sphi 0, %s134
      %s135 = sphi 0, %s132
      %s136 = sphi 0, %s135
      %s152 = sphi 0, %s136
      %s158 = sphi 0, %s160
      %s161 = sphi 0, %s158
      %s162 = sphi 0, %s161
      %s178 = sphi 0, %s162
      %s186 = sphi 0, %s188
      %s189 = sphi 0, %s186
      %s190 = sphi 0, %s189
      %s206 = sphi 0, %s190
      %s214 = sphi 0, %s216
      %s217 = sphi 0, %s214
      %s218 = sphi 0, %s217
      %s234 = sphi 0, %s218
    $region4: #{tpu_custom_call.1} parent=1 // loop_header_branch
      %22 = sbr.rel (%p20) target = $region8
    $region5: #{tpu_custom_call.1} parent=1 // loop_body
      %s24 = ssub.s32 %s19, 1
      %s25 = ssub.s32 %s19, 2
      %s35 = sadd.s32 1, %s28
      %p36 = scmp.ge.s32.totalorder %s35, 1
      %s37 = scalar_select %p36, 0, %s35
      %s38 = sadd.s32 1, %s27
      %s39 = scalar_select %p36, %s38, %s27
      %p40 = scmp.ge.s32.totalorder %s39, 1
      %s41 = scalar_select %p40, 0, %s39
      %s42 = sadd.s32 1, %s26
      %s43 = scalar_select %p40, %s42, %s26
      %p44 = scmp.ge.s32.totalorder %s43, 2
      %s45 = scalar_select %p44, 0, %s43
      %s46 = ssub.s32 %s26, %s45
      %s47 = ssub.s32 %s28, %s37
      %s48 = sor.u32 %s46, %s47
      %p49 = scmp.eq.s32.totalorder %s48, 0
      %s51 = sadd.s32 %s50, 1
      %s52 = scalar_select %p49, %s50, %s51
      %p55 = pneg %p49
      %p56 = scmp.eq.s32.totalorder %s19, 1
      %p57 = por %p55, %p56
      %p58 = scmp.ne.s32.totalorder %s50, %s53
      %p59 = scmp.eq.s32.totalorder %s19, 0
      %p60 = por %p58, %p59
      %p61 = scmp.ne.s32.totalorder %s50, %s53
      %p62 = scmp.eq.s32.totalorder %s24, 1
      %p63 = por %p61, %p62
      %p64 = scmp.ne.s32.totalorder %s53, %s54
      %p65 = scmp.eq.s32.totalorder %s24, 0
      %p66 = por %p64, %p65
      %p67 = scmp.ne.s32.totalorder %s53, %s54
      %p68 = scmp.eq.s32.totalorder %s25, 1
      %p69 = por %p67, %p68
      %p71 = scmp.ne.s32.totalorder %s54, %s70
      %p72 = scmp.eq.s32.totalorder %s25, 0
      %p73 = por %p71, %p72
      %s74 = ssub.s32 %s28, %s37
      %s75 = ssub.s32 %s27, %s41
      %s76 = sor.u32 %s74, %s75
      %p77 = scmp.eq.s32.totalorder %s76, 0
      %s79 = sadd.s32 %s78, 1
      %s80 = scalar_select %p77, %s78, %s79
      %p83 = pneg %p77
      %p84 = scmp.eq.s32.totalorder %s19, 1
      %p85 = por %p83, %p84
      %p86 = scmp.ne.s32.totalorder %s78, %s81
      %p87 = scmp.eq.s32.totalorder %s19, 0
      %p88 = por %p86, %p87
      %p89 = scmp.ne.s32.totalorder %s78, %s81
      %p90 = scmp.eq.s32.totalorder %s24, 1
      %p91 = por %p89, %p90
      %p92 = scmp.ne.s32.totalorder %s81, %s82
      %p93 = scmp.eq.s32.totalorder %s24, 0
      %p94 = por %p92, %p93
      %p95 = scmp.ne.s32.totalorder %s81, %s82
      %p96 = scmp.eq.s32.totalorder %s25, 1
      %p97 = por %p95, %p96
      %p99 = scmp.ne.s32.totalorder %s82, %s98
      %p100 = scmp.eq.s32.totalorder %s25, 0
      %p101 = por %p99, %p100
      %s102 = ssub.s32 %s28, %s37
      %s103 = ssub.s32 %s27, %s41
      %s104 = sor.u32 %s102, %s103
      %p105 = scmp.eq.s32.totalorder %s104, 0
      %s107 = sadd.s32 %s106, 1
      %s108 = scalar_select %p105, %s106, %s107
      %p111 = pneg %p105
      %p112 = scmp.eq.s32.totalorder %s19, 1
      %p113 = por %p111, %p112
      %p114 = scmp.ne.s32.totalorder %s106, %s109
      %p115 = scmp.eq.s32.totalorder %s19, 0
      %p116 = por %p114, %p115
      %p117 = scmp.ne.s32.totalorder %s106, %s109
      %p118 = scmp.eq.s32.totalorder %s24, 1
      %p119 = por %p117, %p118
      %p120 = scmp.ne.s32.totalorder %s109, %s110
      %p121 = scmp.eq.s32.totalorder %s24, 0
      %p122 = por %p120, %p121
      %p123 = scmp.ne.s32.totalorder %s109, %s110
      %p124 = scmp.eq.s32.totalorder %s25, 1
      %p125 = por %p123, %p124
      %p127 = scmp.ne.s32.totalorder %s110, %s126
      %p128 = scmp.eq.s32.totalorder %s25, 0
      %p129 = por %p127, %p128
      %s130 = ssub.s32 %s27, %s41
      %p131 = scmp.eq.s32.totalorder %s130, 0
      %s133 = sadd.s32 %s132, 1
      %s134 = scalar_select %p131, %s132, %s133
      %p137 = pneg %p131
      %p138 = scmp.eq.s32.totalorder %s19, 1
      %p139 = por %p137, %p138
      %p140 = scmp.ne.s32.totalorder %s132, %s135
      %p141 = scmp.eq.s32.totalorder %s19, 0
      %p142 = por %p140, %p141
      %p143 = scmp.ne.s32.totalorder %s132, %s135
      %p144 = scmp.eq.s32.totalorder %s24, 1
      %p145 = por %p143, %p144
      %p146 = scmp.ne.s32.totalorder %s135, %s136
      %p147 = scmp.eq.s32.totalorder %s24, 0
      %p148 = por %p146, %p147
      %p149 = scmp.ne.s32.totalorder %s135, %s136
      %p150 = scmp.eq.s32.totalorder %s25, 1
      %p151 = por %p149, %p150
      %p153 = scmp.ne.s32.totalorder %s136, %s152
      %p154 = scmp.eq.s32.totalorder %s25, 0
      %p155 = por %p153, %p154
      %s156 = ssub.s32 %s27, %s41
      %p157 = scmp.eq.s32.totalorder %s156, 0
      %s159 = sadd.s32 %s158, 1
      %s160 = scalar_select %p157, %s158, %s159
      %p163 = pneg %p157
      %p164 = scmp.eq.s32.totalorder %s19, 1
      %p165 = por %p163, %p164
      %p166 = scmp.ne.s32.totalorder %s158, %s161
      %p167 = scmp.eq.s32.totalorder %s19, 0
      %p168 = por %p166, %p167
      %p169 = scmp.ne.s32.totalorder %s158, %s161
      %p170 = scmp.eq.s32.totalorder %s24, 1
      %p171 = por %p169, %p170
      %p172 = scmp.ne.s32.totalorder %s161, %s162
      %p173 = scmp.eq.s32.totalorder %s24, 0
      %p174 = por %p172, %p173
      %p175 = scmp.ne.s32.totalorder %s161, %s162
      %p176 = scmp.eq.s32.totalorder %s25, 1
      %p177 = por %p175, %p176
      %p179 = scmp.ne.s32.totalorder %s162, %s178
      %p180 = scmp.eq.s32.totalorder %s25, 0
      %p181 = por %p179, %p180
      %s182 = ssub.s32 %s26, %s45
      %s183 = ssub.s32 %s27, %s41
      %s184 = sor.u32 %s182, %s183
      %p185 = scmp.eq.s32.totalorder %s184, 0
      %s187 = sadd.s32 %s186, 1
      %s188 = scalar_select %p185, %s186, %s187
      %p191 = pneg %p185
      %p192 = scmp.eq.s32.totalorder %s19, 1
      %p193 = por %p191, %p192
      %p194 = scmp.ne.s32.totalorder %s186, %s189
      %p195 = scmp.eq.s32.totalorder %s19, 0
      %p196 = por %p194, %p195
      %p197 = scmp.ne.s32.totalorder %s186, %s189
      %p198 = scmp.eq.s32.totalorder %s24, 1
      %p199 = por %p197, %p198
      %p200 = scmp.ne.s32.totalorder %s189, %s190
      %p201 = scmp.eq.s32.totalorder %s24, 0
      %p202 = por %p200, %p201
      %p203 = scmp.ne.s32.totalorder %s189, %s190
      %p204 = scmp.eq.s32.totalorder %s25, 1
      %p205 = por %p203, %p204
      %p207 = scmp.ne.s32.totalorder %s190, %s206
      %p208 = scmp.eq.s32.totalorder %s25, 0
      %p209 = por %p207, %p208
      %s210 = ssub.s32 %s26, %s45
      %s211 = ssub.s32 %s27, %s41
      %s212 = sor.u32 %s210, %s211
      %p213 = scmp.eq.s32.totalorder %s212, 0
      %s215 = sadd.s32 %s214, 1
      %s216 = scalar_select %p213, %s214, %s215
      %p219 = pneg %p213
      %p220 = scmp.eq.s32.totalorder %s19, 1
      %p221 = por %p219, %p220
      %p222 = scmp.ne.s32.totalorder %s214, %s217
      %p223 = scmp.eq.s32.totalorder %s19, 0
      %p224 = por %p222, %p223
      %p225 = scmp.ne.s32.totalorder %s214, %s217
      %p226 = scmp.eq.s32.totalorder %s24, 1
      %p227 = por %p225, %p226
      %p228 = scmp.ne.s32.totalorder %s217, %s218
      %p229 = scmp.eq.s32.totalorder %s24, 0
      %p230 = por %p228, %p229
      %p231 = scmp.ne.s32.totalorder %s217, %s218
      %p232 = scmp.eq.s32.totalorder %s25, 1
      %p233 = por %p231, %p232
      %p235 = scmp.ne.s32.totalorder %s218, %s234
      %p236 = scmp.eq.s32.totalorder %s25, 0
      %p237 = por %p235, %p236
      %p238 = scmp.le.s32.totalorder 1, %s19
      %p239 = scmp.lt.s32.totalorder %s19, 3
      %p240 = pnand %p238, %p239
      %p241 = pneg %p240
      // Predicated region
      $region9: #{tpu_custom_call.1} parent=5 // pred_check
        _
      $region10: #{tpu_custom_call.1} parent=5 // pred_check_branch
        %243 = sbr.rel (%p240) target = $region12
      $region11: #{tpu_custom_call.1} parent=5 // pred_region
        %s244 = ssub.s32 %s19, 1
        // Predicated region
        $region13: #{tpu_custom_call.1} parent=11 // pred_check
          %p245 = pneg %p94
        $region14: #{tpu_custom_call.1} parent=11 // pred_check_branch
          %247 = sbr.rel (%p245) target = $region16
        $region15: #{tpu_custom_call.1} parent=11 // pred_region
          %s248 = smul.u32 2, %s31
          %p249 = scmp.lt.s32.totalorder %s248, 1
          %s250 = scalar_select %p249, %s248, 1
          %p251 = scmp.lt.s32.totalorder %s30, 0
          %s252 = scalar_select %p251, %s30, 0
          %s253 = sadd.s32 %s252, %s250
          %s254 = smul.addr %s253, 8
          %s255 = scalar_lea.vmem %s1, %s254
          %s256 = smul.u32 2, %s31
        $region16: #{tpu_custom_call.1} parent=11 // pred_fallthru
          _
        // Predicated region
        $region17: #{tpu_custom_call.1} parent=11 // pred_check
          %p257 = pneg %p122
        $region18: #{tpu_custom_call.1} parent=11 // pred_check_branch
          %259 = sbr.rel (%p257) target = $region20
        $region19: #{tpu_custom_call.1} parent=11 // pred_region
          %s260 = smul.u32 2, %s31
          %p261 = scmp.lt.s32.totalorder %s260, 1
          %s262 = scalar_select %p261, %s260, 1
          %p263 = scmp.lt.s32.totalorder %s30, 0
          %s264 = scalar_select %p263, %s30, 0
          %s265 = sadd.s32 %s264, %s262
          %s266 = smul.addr %s265, 8
          %s267 = scalar_lea.vmem %s2, %s266
          %s268 = smul.u32 2, %s31
        $region20: #{tpu_custom_call.1} parent=11 // pred_fallthru
          _
        // Predicated region
        $region21: #{tpu_custom_call.1} parent=11 // pred_check
          %p269 = pneg %p148
        $region22: #{tpu_custom_call.1} parent=11 // pred_check_branch
          %271 = sbr.rel (%p269) target = $region24
        $region23: #{tpu_custom_call.1} parent=11 // pred_region
          %p272 = scmp.lt.s32.totalorder %s30, 0
          %s273 = scalar_select %p272, %s30, 0
          %s274 = scalar_lea.vmem %s3, %s273
        $region24: #{tpu_custom_call.1} parent=11 // pred_fallthru
          _
        // Predicated region
        $region25: #{tpu_custom_call.1} parent=11 // pred_check
          %p275 = pneg %p174
        $region26: #{tpu_custom_call.1} parent=11 // pred_check_branch
          %277 = sbr.rel (%p275) target = $region28
        $region27: #{tpu_custom_call.1} parent=11 // pred_region
          %p278 = scmp.lt.s32.totalorder %s30, 0
          %s279 = scalar_select %p278, %s30, 0
          %s280 = scalar_lea.vmem %s4, %s279
        $region28: #{tpu_custom_call.1} parent=11 // pred_fallthru
          _
      $region12: #{tpu_custom_call.1} parent=5 // pred_fallthru
        _
      %p281 = scmp.lt.s32.totalorder %s19, 2
      // Predicated region
      $region29: #{tpu_custom_call.1} parent=5 // pred_check
        %p282 = pneg %p281
      $region30: #{tpu_custom_call.1} parent=5 // pred_check_branch
        %284 = sbr.rel (%p282) target = $region32
      $region31: #{tpu_custom_call.1} parent=5 // pred_region
        // Predicated region
        $region33: #{tpu_custom_call.1} parent=31 // pred_check
          %p285 = pneg %p60
        $region34: #{tpu_custom_call.1} parent=31 // pred_check_branch
          %287 = sbr.rel (%p285) target = $region36
        $region35: #{tpu_custom_call.1} parent=31 // pred_region
          %s288 = smul.u32 16, %s26
          %p289 = scmp.lt.s32.totalorder %s288, 31
          %s290 = scalar_select %p289, %s288, 31
          %p291 = scmp.lt.s32.totalorder %s28, 0
          %s292 = scalar_select %p291, %s28, 0
          %s293 = sadd.s32 %s292, %s290
          %s294 = smul.addr %s293, 8
          %s295 = scalar_lea.vmem %s0, %s294
          %s296 = smul.u32 16, %s26
        $region36: #{tpu_custom_call.1} parent=31 // pred_fallthru
          _
      $region32: #{tpu_custom_call.1} parent=5 // pred_fallthru
        _
      %p297 = scmp.le.s32.totalorder 1, %s19
      %p298 = scmp.lt.s32.totalorder %s19, 3
      %p299 = pnand %p297, %p298
      %p300 = pneg %p299
      // Predicated region
      $region37: #{tpu_custom_call.1} parent=5 // pred_check
        _
      $region38: #{tpu_custom_call.1} parent=5 // pred_check_branch
        %302 = sbr.rel (%p299) target = $region40
      $region39: #{tpu_custom_call.1} parent=5 // pred_region
        %s303 = ssub.s32 %s19, 1
        %s304 = smul.u32 16, %s29
        %p305 = scmp.lt.s32.totalorder %s304, 31
        %s306 = scalar_select %p305, %s304, 31
        %p307 = scmp.lt.s32.totalorder %s31, 0
        %s308 = scalar_select %p307, %s31, 0
        %s309 = sadd.s32 %s308, %s306
        %s310 = smul.addr %s309, 8
        %s311 = scalar_lea.vmem %s0, %s310
        %p312 = pneg %p66
        %p313 = pneg %p63
        %s314 = smul.u32 2, %s31
        %p315 = scmp.lt.s32.totalorder %s314, 1
        %s316 = scalar_select %p315, %s314, 1
        %p317 = scmp.lt.s32.totalorder %s30, 0
        %s318 = scalar_select %p317, %s30, 0
        %s319 = sadd.s32 %s318, %s316
        %s320 = smul.addr %s319, 8
        %s321 = scalar_lea.vmem %s1, %s320
        %p322 = pneg %p94
        %p323 = pneg %p91
        %s324 = smul.u32 2, %s31
        %p325 = scmp.lt.s32.totalorder %s324, 1
        %s326 = scalar_select %p325, %s324, 1
        %p327 = scmp.lt.s32.totalorder %s30, 0
        %s328 = scalar_select %p327, %s30, 0
        %s329 = sadd.s32 %s328, %s326
        %s330 = smul.addr %s329, 8
        %s331 = scalar_lea.vmem %s2, %s330
        %p332 = pneg %p122
        %p333 = pneg %p119
        %p334 = scmp.lt.s32.totalorder %s30, 0
        %s335 = scalar_select %p334, %s30, 0
        %s336 = scalar_lea.vmem %s3, %s335
        %p337 = pneg %p148
        %p338 = pneg %p145
        %p339 = scmp.lt.s32.totalorder %s30, 0
        %s340 = scalar_select %p339, %s30, 0
        %s341 = scalar_lea.vmem %s4, %s340
        %p342 = pneg %p174
        %p343 = pneg %p171
        %p344 = pneg %p202
        %p345 = pneg %p199
        %s346 = sand.u32 %s189, 1
        %s347 = scalar_lea.sflag [#allocation5], %s346
        %s348 = sand.u32 %s189, 1
        %s349 = smul.addr %s348, 128
        %s350 = scalar_lea.vmem [#allocation4], %s349
        %p351 = pneg %p230
        %p352 = pneg %p227
        %s353 = sand.u32 %s217, 1
        %s354 = scalar_lea.sflag [#allocation7], %s353
        %s355 = sand.u32 %s217, 1
        %s356 = smul.addr %s355, 128
        %s357 = scalar_lea.vmem [#allocation6], %s356
        %s358 = smul.u32 16, %s29
        %p359 = scmp.lt.s32.totalorder %s358, 31
        %s360 = scalar_select %p359, %s358, 31
        %p361 = scmp.lt.s32.totalorder %s31, 0
        %s362 = scalar_select %p361, %s31, 0
        %s363 = sadd.s32 %s362, %s360
        %s364 = smul.addr %s363, 8
        %s365 = scalar_lea.vmem %s0, %s364
        %s366 = smul.u32 16, %s29
        %s367 = smul.u32 2, %s31
        %p368 = scmp.lt.s32.totalorder %s367, 1
        %s369 = scalar_select %p368, %s367, 1
        %p370 = scmp.lt.s32.totalorder %s30, 0
        %s371 = scalar_select %p370, %s30, 0
        %s372 = sadd.s32 %s371, %s369
        %s373 = smul.addr %s372, 8
        %s374 = scalar_lea.vmem %s1, %s373
        %s375 = smul.u32 2, %s31
        %s376 = smul.u32 2, %s31
        %p377 = scmp.lt.s32.totalorder %s376, 1
        %s378 = scalar_select %p377, %s376, 1
        %p379 = scmp.lt.s32.totalorder %s30, 0
        %s380 = scalar_select %p379, %s30, 0
        %s381 = sadd.s32 %s380, %s378
        %s382 = smul.addr %s381, 8
        %s383 = scalar_lea.vmem %s2, %s382
        %s384 = smul.u32 2, %s31
        %p385 = scmp.lt.s32.totalorder %s30, 0
        %s386 = scalar_select %p385, %s30, 0
        %s387 = scalar_lea.vmem %s3, %s386
        %p388 = scmp.lt.s32.totalorder %s30, 0
        %s389 = scalar_select %p388, %s30, 0
        %s390 = scalar_lea.vmem %s4, %s389
        %s391 = smul.u32 16, %s29
        %s392 = smul.u32 16, %s29
        %p393 = scmp.eq.s32.totalorder %s31, 0
        // Predicated region
        $region41: #{tpu_custom_call.1} parent=39 // pred_check
          %p394 = pneg %p393
        $region42: #{tpu_custom_call.1} parent=39 // pred_check_branch
          %396 = sbr.rel (%p394) target = $region44
        $region43: #{tpu_custom_call.1} parent=39 // pred_region
          %397 = vst [vmem:[#allocation2] sm:$0xff] 0.0
          %398 = vst [vmem:[#allocation2 + $0x8] sm:$0xff] 0.0
          %399 = vst [vmem:[#allocation2 + $0x10] sm:$0xff] 0.0
          %400 = vst [vmem:[#allocation2 + $0x18] sm:$0xff] 0.0
          %401 = vst [vmem:[#allocation2 + $0x20] sm:$0xff] 0.0
          %402 = vst [vmem:[#allocation2 + $0x28] sm:$0xff] 0.0
          %403 = vst [vmem:[#allocation2 + $0x30] sm:$0xff] 0.0
          %404 = vst [vmem:[#allocation2 + $0x38] sm:$0xff] 0.0
          %405 = vst [vmem:[#allocation2 + $0x40] sm:$0xff] 0.0
          %406 = vst [vmem:[#allocation2 + $0x48] sm:$0xff] 0.0
          %407 = vst [vmem:[#allocation2 + $0x50] sm:$0xff] 0.0
          %408 = vst [vmem:[#allocation2 + $0x58] sm:$0xff] 0.0
          %409 = vst [vmem:[#allocation2 + $0x60] sm:$0xff] 0.0
          %410 = vst [vmem:[#allocation2 + $0x68] sm:$0xff] 0.0
          %411 = vst [vmem:[#allocation2 + $0x70] sm:$0xff] 0.0
          %412 = vst [vmem:[#allocation2 + $0x78] sm:$0xff] 0.0
          %413 = vst [vmem:[#allocation3] sm:$0xff] 0.0
          %414 = vst [vmem:[#allocation3 + $0x8] sm:$0xff] 0.0
          %415 = vst [vmem:[#allocation3 + $0x10] sm:$0xff] 0.0
          %416 = vst [vmem:[#allocation3 + $0x18] sm:$0xff] 0.0
          %417 = vst [vmem:[#allocation3 + $0x20] sm:$0xff] 0.0
          %418 = vst [vmem:[#allocation3 + $0x28] sm:$0xff] 0.0
          %419 = vst [vmem:[#allocation3 + $0x30] sm:$0xff] 0.0
          %420 = vst [vmem:[#allocation3 + $0x38] sm:$0xff] 0.0
          %421 = vst [vmem:[#allocation3 + $0x40] sm:$0xff] 0.0
          %422 = vst [vmem:[#allocation3 + $0x48] sm:$0xff] 0.0
          %423 = vst [vmem:[#allocation3 + $0x50] sm:$0xff] 0.0
          %424 = vst [vmem:[#allocation3 + $0x58] sm:$0xff] 0.0
          %425 = vst [vmem:[#allocation3 + $0x60] sm:$0xff] 0.0
          %426 = vst [vmem:[#allocation3 + $0x68] sm:$0xff] 0.0
          %427 = vst [vmem:[#allocation3 + $0x70] sm:$0xff] 0.0
          %428 = vst [vmem:[#allocation3 + $0x78] sm:$0xff] 0.0
        $region44: #{tpu_custom_call.1} parent=39 // pred_fallthru
          _
        %v429 = vld [vmem:[%s365] sm:$0xff]
        %v430 = vld [vmem:[%s365 + $0x8] sm:$0xff]
        %v431 = vld [vmem:[%s365 + $0x10] sm:$0xff]
        %v432 = vld [vmem:[%s365 + $0x18] sm:$0xff]
        %v433 = vld [vmem:[%s365 + $0x20] sm:$0xff]
        %v434 = vld [vmem:[%s365 + $0x28] sm:$0xff]
        %v435 = vld [vmem:[%s365 + $0x30] sm:$0xff]
        %v436 = vld [vmem:[%s365 + $0x38] sm:$0xff]
        %v437 = vld [vmem:[%s365 + $0x40] sm:$0xff]
        %v438 = vld [vmem:[%s365 + $0x48] sm:$0xff]
        %v439 = vld [vmem:[%s365 + $0x50] sm:$0xff]
        %v440 = vld [vmem:[%s365 + $0x58] sm:$0xff]
        %v441 = vld [vmem:[%s365 + $0x60] sm:$0xff]
        %v442 = vld [vmem:[%s365 + $0x68] sm:$0xff]
        %v443 = vld [vmem:[%s365 + $0x70] sm:$0xff]
        %v444 = vld [vmem:[%s365 + $0x78] sm:$0xff]
        %v445 = vld [vmem:[%s374] sm:$0xff]
        %v446 = vld [vmem:[%s374 + $0x8] sm:$0xff]
        %v447 = vld [vmem:[%s383] sm:$0xff]
        %v448 = vld [vmem:[%s383 + $0x8] sm:$0xff]
        %v449 = vld [vmem:[#allocation2] sm:$0xff]
        %v450 = vld [vmem:[#allocation2 + $0x8] sm:$0xff]
        %v451 = vld [vmem:[#allocation2 + $0x10] sm:$0xff]
        %v452 = vld [vmem:[#allocation2 + $0x18] sm:$0xff]
        %v453 = vld [vmem:[#allocation2 + $0x20] sm:$0xff]
        %v454 = vld [vmem:[#allocation2 + $0x28] sm:$0xff]
        %v455 = vld [vmem:[#allocation2 + $0x30] sm:$0xff]
        %v456 = vld [vmem:[#allocation2 + $0x38] sm:$0xff]
        %v457 = vld [vmem:[#allocation2 + $0x40] sm:$0xff]
        %v458 = vld [vmem:[#allocation2 + $0x48] sm:$0xff]
        %v459 = vld [vmem:[#allocation2 + $0x50] sm:$0xff]
        %v460 = vld [vmem:[#allocation2 + $0x58] sm:$0xff]
        %v461 = vld [vmem:[#allocation2 + $0x60] sm:$0xff]
        %v462 = vld [vmem:[#allocation2 + $0x68] sm:$0xff]
        %v463 = vld [vmem:[#allocation2 + $0x70] sm:$0xff]
        %v464 = vld [vmem:[#allocation2 + $0x78] sm:$0xff]
        %vm465 = vcmask 130048
        %v467 = vsel %vm465, %v429, 0
        %v470 = vsel %vm465, %v430, 0
        %v473 = vsel %vm465, %v431, 0
        %v476 = vsel %vm465, %v432, 0
        %v479 = vsel %vm465, %v433, 0
        %v482 = vsel %vm465, %v434, 0
        %v485 = vsel %vm465, %v435, 0
        %v488 = vsel %vm465, %v436, 0
        %v491 = vsel %vm465, %v437, 0
        %v494 = vsel %vm465, %v438, 0
        %v497 = vsel %vm465, %v439, 0
        %v500 = vsel %vm465, %v440, 0
        %v503 = vsel %vm465, %v441, 0
        %v506 = vsel %vm465, %v442, 0
        %v509 = vsel %vm465, %v443, 0
        %v512 = vsel %vm465, %v444, 0
        %514 = vmatpush.msra.mxu0 0.0
        %515 = vmatpush.msra.mxu0 0.0
        %516 = vmatpush.msra.mxu0 0.0
        %517 = vmatpush.msra.mxu0 0.0
        %518 = vmatpush.msra.mxu0 0.0
        %519 = vmatpush.msra.mxu0 0.0
        %520 = vmatpush.msra.mxu0 0.0
        %521 = vmatpush.msra.mxu0 0.0
        %522 = vmatpush.msra.mxu0 0.0
        %523 = vmatpush.msra.mxu0 0.0
        %524 = vmatpush.msra.mxu0 0.0
        %525 = vmatpush.msra.mxu0 0.0
        %526 = vmatpush.msra.mxu0 0.0
        %527 = vmatpush.msra.mxu0 0.0
        %528 = vmatpush.msra.mxu0 %v446
        %529 = vmatpush.msra.mxu0 %v445
        %530 = vmatmul.f32.gmra.mxu0 %v467
        %v531 = vpop.f32.mrf.mxu0
        %v532 = vadd.f32 0.0, %v531
        %533 = vmatmul.f32.gmra.mxu0 %v470
        %v534 = vpop.f32.mrf.mxu0
        %v535 = vadd.f32 0.0, %v534
        %536 = vmatmul.f32.gmra.mxu0 %v473
        %v537 = vpop.f32.mrf.mxu0
        %v538 = vadd.f32 0.0, %v537
        %539 = vmatmul.f32.gmra.mxu0 %v476
        %v540 = vpop.f32.mrf.mxu0
        %v541 = vadd.f32 0.0, %v540
        %542 = vmatmul.f32.gmra.mxu0 %v479
        %v543 = vpop.f32.mrf.mxu0
        %v544 = vadd.f32 0.0, %v543
        %545 = vmatmul.f32.gmra.mxu0 %v482
        %v546 = vpop.f32.mrf.mxu0
        %v547 = vadd.f32 0.0, %v546
        %548 = vmatmul.f32.gmra.mxu0 %v485
        %v549 = vpop.f32.mrf.mxu0
        %v550 = vadd.f32 0.0, %v549
        %551 = vmatmul.f32.gmra.mxu0 %v488
        %v552 = vpop.f32.mrf.mxu0
        %v553 = vadd.f32 0.0, %v552
        %554 = vmatmul.f32.gmra.mxu0 %v491
        %v555 = vpop.f32.mrf.mxu0
        %v556 = vadd.f32 0.0, %v555
        %557 = vmatmul.f32.gmra.mxu0 %v494
        %v558 = vpop.f32.mrf.mxu0
        %v559 = vadd.f32 0.0, %v558
        %560 = vmatmul.f32.gmra.mxu0 %v497
        %v561 = vpop.f32.mrf.mxu0
        %v562 = vadd.f32 0.0, %v561
        %563 = vmatmul.f32.gmra.mxu0 %v500
        %v564 = vpop.f32.mrf.mxu0
        %v565 = vadd.f32 0.0, %v564
        %566 = vmatmul.f32.gmra.mxu0 %v503
        %v567 = vpop.f32.mrf.mxu0
        %v568 = vadd.f32 0.0, %v567
        %569 = vmatmul.f32.gmra.mxu0 %v506
        %v570 = vpop.f32.mrf.mxu0
        %v571 = vadd.f32 0.0, %v570
        %572 = vmatmul.f32.gmra.mxu0 %v509
        %v573 = vpop.f32.mrf.mxu0
        %v574 = vadd.f32 0.0, %v573
        %575 = vmatmul.f32.gmra.mxu0 %v512
        %v576 = vpop.f32.mrf.mxu0
        %v577 = vadd.f32 0.0, %v576
        %578 = vdwg.mxu0
        %v579 = vadd.f32 %v449, %v532
        %v580 = vadd.f32 %v450, %v535
        %v581 = vadd.f32 %v451, %v538
        %v582 = vadd.f32 %v452, %v541
        %v583 = vadd.f32 %v453, %v544
        %v584 = vadd.f32 %v454, %v547
        %v585 = vadd.f32 %v455, %v550
        %v586 = vadd.f32 %v456, %v553
        %v587 = vadd.f32 %v457, %v556
        %v588 = vadd.f32 %v458, %v559
        %v589 = vadd.f32 %v459, %v562
        %v590 = vadd.f32 %v460, %v565
        %v591 = vadd.f32 %v461, %v568
        %v592 = vadd.f32 %v462, %v571
        %v593 = vadd.f32 %v463, %v574
        %v594 = vadd.f32 %v464, %v577
        %595 = vst [vmem:[#allocation2] sm:$0xff] %v579
        %596 = vst [vmem:[#allocation2 + $0x8] sm:$0xff] %v580
        %597 = vst [vmem:[#allocation2 + $0x10] sm:$0xff] %v581
        %598 = vst [vmem:[#allocation2 + $0x18] sm:$0xff] %v582
        %599 = vst [vmem:[#allocation2 + $0x20] sm:$0xff] %v583
        %600 = vst [vmem:[#allocation2 + $0x28] sm:$0xff] %v584
        %601 = vst [vmem:[#allocation2 + $0x30] sm:$0xff] %v585
        %602 = vst [vmem:[#allocation2 + $0x38] sm:$0xff] %v586
        %603 = vst [vmem:[#allocation2 + $0x40] sm:$0xff] %v587
        %604 = vst [vmem:[#allocation2 + $0x48] sm:$0xff] %v588
        %605 = vst [vmem:[#allocation2 + $0x50] sm:$0xff] %v589
        %606 = vst [vmem:[#allocation2 + $0x58] sm:$0xff] %v590
        %607 = vst [vmem:[#allocation2 + $0x60] sm:$0xff] %v591
        %608 = vst [vmem:[#allocation2 + $0x68] sm:$0xff] %v592
        %609 = vst [vmem:[#allocation2 + $0x70] sm:$0xff] %v593
        %610 = vst [vmem:[#allocation2 + $0x78] sm:$0xff] %v594
        %v611 = vld [vmem:[#allocation3] sm:$0xff]
        %v612 = vld [vmem:[#allocation3 + $0x8] sm:$0xff]
        %v613 = vld [vmem:[#allocation3 + $0x10] sm:$0xff]
        %v614 = vld [vmem:[#allocation3 + $0x18] sm:$0xff]
        %v615 = vld [vmem:[#allocation3 + $0x20] sm:$0xff]
        %v616 = vld [vmem:[#allocation3 + $0x28] sm:$0xff]
        %v617 = vld [vmem:[#allocation3 + $0x30] sm:$0xff]
        %v618 = vld [vmem:[#allocation3 + $0x38] sm:$0xff]
        %v619 = vld [vmem:[#allocation3 + $0x40] sm:$0xff]
        %v620 = vld [vmem:[#allocation3 + $0x48] sm:$0xff]
        %v621 = vld [vmem:[#allocation3 + $0x50] sm:$0xff]
        %v622 = vld [vmem:[#allocation3 + $0x58] sm:$0xff]
        %v623 = vld [vmem:[#allocation3 + $0x60] sm:$0xff]
        %v624 = vld [vmem:[#allocation3 + $0x68] sm:$0xff]
        %v625 = vld [vmem:[#allocation3 + $0x70] sm:$0xff]
        %v626 = vld [vmem:[#allocation3 + $0x78] sm:$0xff]
        %627 = vmatpush.msra.mxu0 0.0
        %628 = vmatpush.msra.mxu0 0.0
        %629 = vmatpush.msra.mxu0 0.0
        %630 = vmatpush.msra.mxu0 0.0
        %631 = vmatpush.msra.mxu0 0.0
        %632 = vmatpush.msra.mxu0 0.0
        %633 = vmatpush.msra.mxu0 0.0
        %634 = vmatpush.msra.mxu0 0.0
        %635 = vmatpush.msra.mxu0 0.0
        %636 = vmatpush.msra.mxu0 0.0
        %637 = vmatpush.msra.mxu0 0.0
        %638 = vmatpush.msra.mxu0 0.0
        %639 = vmatpush.msra.mxu0 0.0
        %640 = vmatpush.msra.mxu0 0.0
        %641 = vmatpush.msra.mxu0 %v448
        %642 = vmatpush.msra.mxu0 %v447
        %643 = vmatmul.f32.gmra.mxu0 %v467
        %v644 = vpop.f32.mrf.mxu0
        %v645 = vadd.f32 0.0, %v644
        %646 = vmatmul.f32.gmra.mxu0 %v470
        %v647 = vpop.f32.mrf.mxu0
        %v648 = vadd.f32 0.0, %v647
        %649 = vmatmul.f32.gmra.mxu0 %v473
        %v650 = vpop.f32.mrf.mxu0
        %v651 = vadd.f32 0.0, %v650
        %652 = vmatmul.f32.gmra.mxu0 %v476
        %v653 = vpop.f32.mrf.mxu0
        %v654 = vadd.f32 0.0, %v653
        %655 = vmatmul.f32.gmra.mxu0 %v479
        %v656 = vpop.f32.mrf.mxu0
        %v657 = vadd.f32 0.0, %v656
        %658 = vmatmul.f32.gmra.mxu0 %v482
        %v659 = vpop.f32.mrf.mxu0
        %v660 = vadd.f32 0.0, %v659
        %661 = vmatmul.f32.gmra.mxu0 %v485
        %v662 = vpop.f32.mrf.mxu0
        %v663 = vadd.f32 0.0, %v662
        %664 = vmatmul.f32.gmra.mxu0 %v488
        %v665 = vpop.f32.mrf.mxu0
        %v666 = vadd.f32 0.0, %v665
        %667 = vmatmul.f32.gmra.mxu0 %v491
        %v668 = vpop.f32.mrf.mxu0
        %v669 = vadd.f32 0.0, %v668
        %670 = vmatmul.f32.gmra.mxu0 %v494
        %v671 = vpop.f32.mrf.mxu0
        %v672 = vadd.f32 0.0, %v671
        %673 = vmatmul.f32.gmra.mxu0 %v497
        %v674 = vpop.f32.mrf.mxu0
        %v675 = vadd.f32 0.0, %v674
        %676 = vmatmul.f32.gmra.mxu0 %v500
        %v677 = vpop.f32.mrf.mxu0
        %v678 = vadd.f32 0.0, %v677
        %679 = vmatmul.f32.gmra.mxu0 %v503
        %v680 = vpop.f32.mrf.mxu0
        %v681 = vadd.f32 0.0, %v680
        %682 = vmatmul.f32.gmra.mxu0 %v506
        %v683 = vpop.f32.mrf.mxu0
        %v684 = vadd.f32 0.0, %v683
        %685 = vmatmul.f32.gmra.mxu0 %v509
        %v686 = vpop.f32.mrf.mxu0
        %v687 = vadd.f32 0.0, %v686
        %688 = vmatmul.f32.gmra.mxu0 %v512
        %v689 = vpop.f32.mrf.mxu0
        %v690 = vadd.f32 0.0, %v689
        %691 = vdwg.mxu0
        %v692 = vadd.f32 %v611, %v645
        %v693 = vadd.f32 %v612, %v648
        %v694 = vadd.f32 %v613, %v651
        %v695 = vadd.f32 %v614, %v654
        %v696 = vadd.f32 %v615, %v657
        %v697 = vadd.f32 %v616, %v660
        %v698 = vadd.f32 %v617, %v663
        %v699 = vadd.f32 %v618, %v666
        %v700 = vadd.f32 %v619, %v669
        %v701 = vadd.f32 %v620, %v672
        %v702 = vadd.f32 %v621, %v675
        %v703 = vadd.f32 %v622, %v678
        %v704 = vadd.f32 %v623, %v681
        %v705 = vadd.f32 %v624, %v684
        %v706 = vadd.f32 %v625, %v687
        %v707 = vadd.f32 %v626, %v690
        %708 = vst [vmem:[#allocation3] sm:$0xff] %v692
        %709 = vst [vmem:[#allocation3 + $0x8] sm:$0xff] %v693
        %710 = vst [vmem:[#allocation3 + $0x10] sm:$0xff] %v694
        %711 = vst [vmem:[#allocation3 + $0x18] sm:$0xff] %v695
        %712 = vst [vmem:[#allocation3 + $0x20] sm:$0xff] %v696
        %713 = vst [vmem:[#allocation3 + $0x28] sm:$0xff] %v697
        %714 = vst [vmem:[#allocation3 + $0x30] sm:$0xff] %v698
        %715 = vst [vmem:[#allocation3 + $0x38] sm:$0xff] %v699
        %716 = vst [vmem:[#allocation3 + $0x40] sm:$0xff] %v700
        %717 = vst [vmem:[#allocation3 + $0x48] sm:$0xff] %v701
        %718 = vst [vmem:[#allocation3 + $0x50] sm:$0xff] %v702
        %719 = vst [vmem:[#allocation3 + $0x58] sm:$0xff] %v703
        %720 = vst [vmem:[#allocation3 + $0x60] sm:$0xff] %v704
        %721 = vst [vmem:[#allocation3 + $0x68] sm:$0xff] %v705
        %722 = vst [vmem:[#allocation3 + $0x70] sm:$0xff] %v706
        %723 = vst [vmem:[#allocation3 + $0x78] sm:$0xff] %v707
        // Predicated region
        $region45: #{tpu_custom_call.1} parent=39 // pred_check
          %p724 = pneg %p393
        $region46: #{tpu_custom_call.1} parent=39 // pred_check_branch
          %726 = sbr.rel (%p724) target = $region48
        $region47: #{tpu_custom_call.1} parent=39 // pred_region
          %v727 = vld [vmem:[#allocation2] sm:$0xff]
          %v728 = vld [vmem:[#allocation2 + $0x8] sm:$0xff]
          %v729 = vld [vmem:[#allocation2 + $0x10] sm:$0xff]
          %v730 = vld [vmem:[#allocation2 + $0x18] sm:$0xff]
          %v731 = vld [vmem:[#allocation2 + $0x20] sm:$0xff]
          %v732 = vld [vmem:[#allocation2 + $0x28] sm:$0xff]
          %v733 = vld [vmem:[#allocation2 + $0x30] sm:$0xff]
          %v734 = vld [vmem:[#allocation2 + $0x38] sm:$0xff]
          %v735 = vld [vmem:[#allocation2 + $0x40] sm:$0xff]
          %v736 = vld [vmem:[#allocation2 + $0x48] sm:$0xff]
          %v737 = vld [vmem:[#allocation2 + $0x50] sm:$0xff]
          %v738 = vld [vmem:[#allocation2 + $0x58] sm:$0xff]
          %v739 = vld [vmem:[#allocation2 + $0x60] sm:$0xff]
          %v740 = vld [vmem:[#allocation2 + $0x68] sm:$0xff]
          %v741 = vld [vmem:[#allocation2 + $0x70] sm:$0xff]
          %v742 = vld [vmem:[#allocation2 + $0x78] sm:$0xff]
          %v743 = vld [vmem:[%s387] sm:$0x1]
          %v745 = vperm.slane %v743, 0
          %v747 = vadd.f32 %v727, %v745
          %v748 = vadd.f32 %v728, %v745
          %v749 = vadd.f32 %v729, %v745
          %v750 = vadd.f32 %v730, %v745
          %v751 = vadd.f32 %v731, %v745
          %v752 = vadd.f32 %v732, %v745
          %v753 = vadd.f32 %v733, %v745
          %v754 = vadd.f32 %v734, %v745
          %v755 = vadd.f32 %v735, %v745
          %v756 = vadd.f32 %v736, %v745
          %v757 = vadd.f32 %v737, %v745
          %v758 = vadd.f32 %v738, %v745
          %v759 = vadd.f32 %v739, %v745
          %v760 = vadd.f32 %v740, %v745
          %v761 = vadd.f32 %v741, %v745
          %v762 = vadd.f32 %v742, %v745
          %v763 = vld [vmem:[#allocation3] sm:$0xff]
          %v764 = vld [vmem:[#allocation3 + $0x8] sm:$0xff]
          %v765 = vld [vmem:[#allocation3 + $0x10] sm:$0xff]
          %v766 = vld [vmem:[#allocation3 + $0x18] sm:$0xff]
          %v767 = vld [vmem:[#allocation3 + $0x20] sm:$0xff]
          %v768 = vld [vmem:[#allocation3 + $0x28] sm:$0xff]
          %v769 = vld [vmem:[#allocation3 + $0x30] sm:$0xff]
          %v770 = vld [vmem:[#allocation3 + $0x38] sm:$0xff]
          %v771 = vld [vmem:[#allocation3 + $0x40] sm:$0xff]
          %v772 = vld [vmem:[#allocation3 + $0x48] sm:$0xff]
          %v773 = vld [vmem:[#allocation3 + $0x50] sm:$0xff]
          %v774 = vld [vmem:[#allocation3 + $0x58] sm:$0xff]
          %v775 = vld [vmem:[#allocation3 + $0x60] sm:$0xff]
          %v776 = vld [vmem:[#allocation3 + $0x68] sm:$0xff]
          %v777 = vld [vmem:[#allocation3 + $0x70] sm:$0xff]
          %v778 = vld [vmem:[#allocation3 + $0x78] sm:$0xff]
          %v779 = vld [vmem:[%s390] sm:$0x1]
          %v781 = vperm.slane %v779, 0
          %v783 = vadd.f32 %v763, %v781
          %v784 = vadd.f32 %v764, %v781
          %v785 = vadd.f32 %v765, %v781
          %v786 = vadd.f32 %v766, %v781
          %v787 = vadd.f32 %v767, %v781
          %v788 = vadd.f32 %v768, %v781
          %v789 = vadd.f32 %v769, %v781
          %v790 = vadd.f32 %v770, %v781
          %v791 = vadd.f32 %v771, %v781
          %v792 = vadd.f32 %v772, %v781
          %v793 = vadd.f32 %v773, %v781
          %v794 = vadd.f32 %v774, %v781
          %v795 = vadd.f32 %v775, %v781
          %v796 = vadd.f32 %v776, %v781
          %v797 = vadd.f32 %v777, %v781
          %v798 = vadd.f32 %v778, %v781
          %v799 = vmax.f32 %v747, 0.0
          %v800 = vmax.f32 %v748, 0.0
          %v801 = vmax.f32 %v749, 0.0
          %v802 = vmax.f32 %v750, 0.0
          %v803 = vmax.f32 %v751, 0.0
          %v804 = vmax.f32 %v752, 0.0
          %v805 = vmax.f32 %v753, 0.0
          %v806 = vmax.f32 %v754, 0.0
          %v807 = vmax.f32 %v755, 0.0
          %v808 = vmax.f32 %v756, 0.0
          %v809 = vmax.f32 %v757, 0.0
          %v810 = vmax.f32 %v758, 0.0
          %v811 = vmax.f32 %v759, 0.0
          %v812 = vmax.f32 %v760, 0.0
          %v813 = vmax.f32 %v761, 0.0
          %v814 = vmax.f32 %v762, 0.0
          %v815 = vmax.f32 %v783, 0.0
          %v816 = vmax.f32 %v784, 0.0
          %v817 = vmax.f32 %v785, 0.0
          %v818 = vmax.f32 %v786, 0.0
          %v819 = vmax.f32 %v787, 0.0
          %v820 = vmax.f32 %v788, 0.0
          %v821 = vmax.f32 %v789, 0.0
          %v822 = vmax.f32 %v790, 0.0
          %v823 = vmax.f32 %v791, 0.0
          %v824 = vmax.f32 %v792, 0.0
          %v825 = vmax.f32 %v793, 0.0
          %v826 = vmax.f32 %v794, 0.0
          %v827 = vmax.f32 %v795, 0.0
          %v828 = vmax.f32 %v796, 0.0
          %v829 = vmax.f32 %v797, 0.0
          %v830 = vmax.f32 %v798, 0.0
          %831 = vst [vmem:[%s350] sm:$0xff] %v799
          %832 = vst [vmem:[%s350 + $0x8] sm:$0xff] %v800
          %833 = vst [vmem:[%s350 + $0x10] sm:$0xff] %v801
          %834 = vst [vmem:[%s350 + $0x18] sm:$0xff] %v802
          %835 = vst [vmem:[%s350 + $0x20] sm:$0xff] %v803
          %836 = vst [vmem:[%s350 + $0x28] sm:$0xff] %v804
          %837 = vst [vmem:[%s350 + $0x30] sm:$0xff] %v805
          %838 = vst [vmem:[%s350 + $0x38] sm:$0xff] %v806
          %839 = vst [vmem:[%s350 + $0x40] sm:$0xff] %v807
          %840 = vst [vmem:[%s350 + $0x48] sm:$0xff] %v808
          %841 = vst [vmem:[%s350 + $0x50] sm:$0xff] %v809
          %842 = vst [vmem:[%s350 + $0x58] sm:$0xff] %v810
          %843 = vst [vmem:[%s350 + $0x60] sm:$0xff] %v811
          %844 = vst [vmem:[%s350 + $0x68] sm:$0xff] %v812
          %845 = vst [vmem:[%s350 + $0x70] sm:$0xff] %v813
          %846 = vst [vmem:[%s350 + $0x78] sm:$0xff] %v814
          %847 = vst [vmem:[%s357] sm:$0xff] %v815
          %848 = vst [vmem:[%s357 + $0x8] sm:$0xff] %v816
          %849 = vst [vmem:[%s357 + $0x10] sm:$0xff] %v817
          %850 = vst [vmem:[%s357 + $0x18] sm:$0xff] %v818
          %851 = vst [vmem:[%s357 + $0x20] sm:$0xff] %v819
          %852 = vst [vmem:[%s357 + $0x28] sm:$0xff] %v820
          %853 = vst [vmem:[%s357 + $0x30] sm:$0xff] %v821
          %854 = vst [vmem:[%s357 + $0x38] sm:$0xff] %v822
          %855 = vst [vmem:[%s357 + $0x40] sm:$0xff] %v823
          %856 = vst [vmem:[%s357 + $0x48] sm:$0xff] %v824
          %857 = vst [vmem:[%s357 + $0x50] sm:$0xff] %v825
          %858 = vst [vmem:[%s357 + $0x58] sm:$0xff] %v826
          %859 = vst [vmem:[%s357 + $0x60] sm:$0xff] %v827
          %860 = vst [vmem:[%s357 + $0x68] sm:$0xff] %v828
          %861 = vst [vmem:[%s357 + $0x70] sm:$0xff] %v829
          %862 = vst [vmem:[%s357 + $0x78] sm:$0xff] %v830
        $region48: #{tpu_custom_call.1} parent=39 // pred_fallthru
          _
        %s863 = sand.u32 %s189, 1
        %s864 = scalar_lea.sflag [#allocation5], %s863
        %s865 = sand.u32 %s189, 1
        %s866 = smul.addr %s865, 128
        %s867 = scalar_lea.vmem [#allocation4], %s866
        %s868 = sand.u32 %s217, 1
        %s869 = scalar_lea.sflag [#allocation7], %s868
        %s870 = sand.u32 %s217, 1
        %s871 = smul.addr %s870, 128
        %s872 = scalar_lea.vmem [#allocation6], %s871
        // Predicated region
        $region49: #{tpu_custom_call.1} parent=39 // pred_check
          %p873 = pneg %p199
        $region50: #{tpu_custom_call.1} parent=39 // pred_check_branch
          %875 = sbr.rel (%p873) target = $region52
        $region51: #{tpu_custom_call.1} parent=39 // pred_region
          %s876 = smul.u32 16, %s29
          %878 = vsyncadd %s864, 0
          %s879 = sadd.s32 %s30, %s876
          %s880 = smul.addr %s879, 8
          %s881 = scalar_lea.hbm %s5, %s880
          %s882 = sshll.u32 %s867, 4
          %s883 = int_to_ptr.vmem [resolvable:$true] %s882
          %s884 = sshll.u32 %s881, 4
          %s885 = int_to_ptr.hbm [resolvable:$true] %s884
          %890 = dma.vmem_to_hbm [thread:$0]  %s883, 2048, %s885, %s864, 128, 128, 8
        $region52: #{tpu_custom_call.1} parent=39 // pred_fallthru
          _
        // Predicated region
        $region53: #{tpu_custom_call.1} parent=39 // pred_check
          %p891 = pneg %p227
        $region54: #{tpu_custom_call.1} parent=39 // pred_check_branch
          %893 = sbr.rel (%p891) target = $region56
        $region55: #{tpu_custom_call.1} parent=39 // pred_region
          %s894 = smul.u32 16, %s29
          %896 = vsyncadd %s869, 0
          %s897 = sadd.s32 %s30, %s894
          %s898 = smul.addr %s897, 8
          %s899 = scalar_lea.hbm %s6, %s898
          %s900 = sshll.u32 %s872, 4
          %s901 = int_to_ptr.vmem [resolvable:$true] %s900
          %s902 = sshll.u32 %s899, 4
          %s903 = int_to_ptr.hbm [resolvable:$true] %s902
          %908 = dma.vmem_to_hbm [thread:$0]  %s901, 2048, %s903, %s869, 128, 128, 8
        $region56: #{tpu_custom_call.1} parent=39 // pred_fallthru
          _
      $region40: #{tpu_custom_call.1} parent=5 // pred_fallthru
        _
      %p909 = scmp.le.s32.totalorder 2, %s19
      // Predicated region
      $region57: #{tpu_custom_call.1} parent=5 // pred_check
        %p910 = pneg %p909
      $region58: #{tpu_custom_call.1} parent=5 // pred_check_branch
        %912 = sbr.rel (%p910) target = $region60
      $region59: #{tpu_custom_call.1} parent=5 // pred_region
        %s913 = ssub.s32 %s19, 2
        // Predicated region
        $region61: #{tpu_custom_call.1} parent=59 // pred_check
          %p914 = pneg %p205
        $region62: #{tpu_custom_call.1} parent=59 // pred_check_branch
          %916 = sbr.rel (%p914) target = $region64
        $region63: #{tpu_custom_call.1} parent=59 // pred_region
          %s917 = sand.u32 %s190, 1
          %s918 = scalar_lea.sflag [#allocation5], %s917
          %s919 = sand.u32 %s190, 1
          %s920 = smul.addr %s919, 128
          %s921 = scalar_lea.vmem [#allocation4], %s920
          %923 = dma.done %s918, 2048
        $region64: #{tpu_custom_call.1} parent=59 // pred_fallthru
          _
        // Predicated region
        $region65: #{tpu_custom_call.1} parent=59 // pred_check
          %p924 = pneg %p233
        $region66: #{tpu_custom_call.1} parent=59 // pred_check_branch
          %926 = sbr.rel (%p924) target = $region68
        $region67: #{tpu_custom_call.1} parent=59 // pred_region
          %s927 = sand.u32 %s218, 1
          %s928 = scalar_lea.sflag [#allocation7], %s927
          %s929 = sand.u32 %s218, 1
          %s930 = smul.addr %s929, 128
          %s931 = scalar_lea.vmem [#allocation6], %s930
          %933 = dma.done %s928, 2048
        $region68: #{tpu_custom_call.1} parent=59 // pred_fallthru
          _
      $region60: #{tpu_custom_call.1} parent=5 // pred_fallthru
        _
    $region6: #{tpu_custom_call.1} parent=1 // loop_footer
      %s23 = sadd.s32 1, %s19
    $region7: #{tpu_custom_call.1} parent=1 // loop_footer_branch
      %18 = sbr.rel target = $region3
    $region8: #{tpu_custom_call.1} parent=1 // loop_exit
      _
    %934 = vsyncpa [#allocation5], 1
    %s935 = scalar_lea.sflag [#allocation5], 1
    %936 = vsyncpa %s935, 1
    %937 = vsyncpa [#allocation7], 1
    %s938 = scalar_lea.sflag [#allocation7], 1
    %939 = vsyncpa %s938, 1

</llo_original>
